<compile_context>
chip_gen: v5e
topology: v5e:2x2
jax: 0.10.0
libtpu: 0.0.40
codegen_flags: <defaults>
</compile_context>

<pallas_src>
import functools

import numpy as np
import jax
import jax.numpy as jnp
from jax.experimental import pallas as pl
from jax.experimental.pallas import tpu as pltpu


def _conv_relu_kernel(x_ref, w_ref, b_ref, m_ref, o_ref, buf_ref, col_ref, *,
                      n_batch, cin, cin_pad, width, kh, kw, padding,
                      in_flat, out_flat, off):
    # x_ref:   (N, Cin, H*W)               flattened (unpadded) input
    # w_ref:   (Cout, KH*KW*Cin_pad)       weight slab, columns (dh, dw, ci_pad)
    # b_ref:   (Cout, 1)                   bias (f32)
    # m_ref:   (KW, Ho*W)                  width-validity masks (0/1) per dw
    # o_ref:   (N, Cout, Ho*W)             lane-dense output
    # buf_ref: (Cin_pad, Lb)      VMEM     flat "padded image" buffer (lane-aligned)
    # col_ref: (KH*KW*Cin_pad, N*Ho*W) VMEM  im2col slab
    base = padding * width + padding

    # Zero the whole pad buffer once per call: covers head/tail padding rows and
    # the padded (zero) channel rows.  Full-tile, lane-aligned stores.
    buf_ref[...] = jnp.zeros(buf_ref.shape, buf_ref.dtype)

    for n in range(n_batch):
        # Place batch element n into the lane-aligned data region of buf.
        buf_ref[:cin, off:off + in_flat] = x_ref[n]

        # im2col: one constant lane-offset window per tap.  Width masks realize
        # the left/right zero padding; head/tail zeros realize the top/bottom.
        for dh in range(kh):
            for dw in range(kw):
                t = dh * kw + dw
                s = off + dh * width + dw - base
                win = buf_ref[:, s:s + out_flat]              # (Cin_pad, Ho*W)
                if dw != padding:                             # center tap: all valid
                    win = win * m_ref[dw:dw + 1, :]
                # Full (8,128)-tile, lane-aligned store.
                col_ref[t * cin_pad:(t + 1) * cin_pad,
                        n * out_flat:(n + 1) * out_flat] = win

    # One fused MXU matmul over all taps and all batch elements, f32 accumulate.
    acc = jnp.dot(w_ref[...], col_ref[...],
                  preferred_element_type=jnp.float32)         # (Cout, N*Ho*W)
    acc = jnp.maximum(acc + b_ref[...], 0.0)                  # bias + ReLU

    for n in range(n_batch):
        # Lane-aligned (Cout, Ho*W) slices of the accumulator.
        o_ref[n] = acc[:, n * out_flat:(n + 1) * out_flat].astype(o_ref.dtype)


def projection_block_forward(x_nchw, weight_oihw, bias, padding):
    """Conv2d(stride=1, padding=padding) + ReLU, PyTorch-compatible NCHW I/O."""
    N, Cin, H, W = x_nchw.shape
    Cout, _, KH, KW = weight_oihw.shape
    Ho = H + 2 * padding - KH + 1
    Wo = W + 2 * padding - KW + 1
    if Wo > W:
        # TODO(synk): padding > (kernel_size-1)//2 (output wider than input) is
        # not supported by the flat-shift layout used here.
        raise NotImplementedError("padding > (kernel_size - 1) // 2")

    cin_pad = ((Cin + 7) // 8) * 8          # full-sublane rows per tap in col slab
    in_flat = H * W
    out_flat = Ho * W                        # kernel-internal output row stride is W
    base = padding * W + padding             # unaligned data offset of pixel (0,0)
    off = -(-base // 128) * 128              # lane-aligned placement of the image
    max_end = off + (KH - 1) * W + (KW - 1) - base + out_flat
    lb = -(-max(off + in_flat, max_end) // 128) * 128

    dtype = x_nchw.dtype
    x_flat = x_nchw.reshape(N, Cin, in_flat)                     # free reshape

    # Tiny one-time weight reorg: (O,I,KH,KW) -> (O,KH,KW,Ipad) -> (O, KH*KW*Ipad)
    # with zero-padded channel columns matching the padded col-slab rows.
    w = jnp.transpose(weight_oihw, (0, 2, 3, 1))
    w = jnp.pad(w, ((0, 0), (0, 0), (0, 0), (0, cin_pad - Cin)))
    w2d = w.reshape(Cout, KH * KW * cin_pad).astype(dtype)
    b2d = bias.reshape(Cout, 1).astype(jnp.float32)

    # Compile-time width-validity masks: output column c is valid for horizontal
    # tap dw iff 0 <= c + dw - padding < W.  (Columns >= Wo, if any, are computed
    # as garbage and sliced off below.)
    c_idx = np.arange(out_flat) % W
    masks_np = np.stack(
        [((c_idx + dw - padding >= 0) & (c_idx + dw - padding < W))
         for dw in range(KW)]).astype(np.float32)
    masks = jnp.asarray(masks_np, dtype=dtype)

    kernel = functools.partial(
        _conv_relu_kernel, n_batch=N, cin=Cin, cin_pad=cin_pad, width=W,
        kh=KH, kw=KW, padding=padding, in_flat=in_flat, out_flat=out_flat,
        off=off)

    itemsize = jnp.dtype(dtype).itemsize
    cost = pl.CostEstimate(
        flops=2 * N * Cout * KH * KW * Cin * Ho * Wo,
        transcendentals=0,
        bytes_accessed=int((x_flat.size + w2d.size + masks.size) * itemsize
                           + b2d.size * 4 + N * Cout * out_flat * itemsize))

    out = pl.pallas_call(
        kernel,
        out_shape=jax.ShapeDtypeStruct((N, Cout, out_flat), dtype),
        grid_spec=pltpu.PrefetchScalarGridSpec(
            num_scalar_prefetch=0,
            grid=(1,),
            in_specs=[
                pl.BlockSpec((N, Cin, in_flat), lambda i: (0, 0, 0)),
                pl.BlockSpec((Cout, KH * KW * cin_pad), lambda i: (0, 0)),
                pl.BlockSpec((Cout, 1), lambda i: (0, 0)),
                pl.BlockSpec((KW, out_flat), lambda i: (0, 0)),
            ],
            out_specs=pl.BlockSpec((N, Cout, out_flat), lambda i: (0, 0, 0)),
            scratch_shapes=[
                pltpu.VMEM((cin_pad, lb), dtype),
                pltpu.VMEM((KH * KW * cin_pad, N * out_flat), dtype),
            ],
        ),
        compiler_params=pltpu.CompilerParams(
            dimension_semantics=("arbitrary",)),
        cost_estimate=cost,
    )(x_flat, w2d, b2d, masks)

    out = out.reshape(N, Cout, Ho, W)                            # free reshape
    if Wo != W:
        out = out[:, :, :, :Wo]
    return out


if __name__ == "__main__":
    # Small shapes consistent with the module: batch=2, in_ch=4, out_ch=8,
    # spatial=16x16, kernel_size=3, padding=1 (output spatial == input).
    N, Cin, Cout, H, W = 2, 4, 8, 16, 16
    KH = KW = 3
    PAD = 1

    key = jax.random.PRNGKey(0)
    kx, kwt, kb = jax.random.split(key, 3)
    x = jax.random.normal(kx, (N, Cin, H, W), dtype=jnp.float32)
    weight = jax.random.normal(kwt, (Cout, Cin, KH, KW), dtype=jnp.float32) * 0.1
    bias = jax.random.normal(kb, (Cout,), dtype=jnp.float32) * 0.1

    y = projection_block_forward(x, weight, bias, PAD)
    y = jax.block_until_ready(y)

    # Reference check against XLA conv (same NCHW/OIHW semantics as PyTorch).
    ref = jax.lax.conv_general_dilated(
        x, weight, window_strides=(1, 1), padding=[(PAD, PAD), (PAD, PAD)],
        dimension_numbers=("NCHW", "OIHW", "NCHW"))
    ref = jnp.maximum(ref + bias.reshape(1, Cout, 1, 1), 0.0)

    assert y.shape == (N, Cout, H, W), y.shape
    assert jnp.allclose(y, ref, atol=1e-4, rtol=1e-4), \
        float(jnp.max(jnp.abs(y - ref)))

    print("KERNEL_OK")
</pallas_src>

<mosaic_0001>
module attributes {stable_mosaic.version = 11 : i64} {
  func.func @_conv_relu_kernel(%arg0: i32, %arg1: memref<2x4x256xf32, #tpu.memory_space<vmem>>, %arg2: memref<8x72xf32, #tpu.memory_space<vmem>>, %arg3: memref<8x1xf32, #tpu.memory_space<vmem>>, %arg4: memref<3x256xf32, #tpu.memory_space<vmem>>, %arg5: memref<2x8x256xf32, #tpu.memory_space<vmem>>, %arg6: memref<8x512xf32, #tpu.memory_space<vmem>>, %arg7: memref<72x512xf32, #tpu.memory_space<vmem>>) attributes {dimension_semantics = [#tpu.dimension_semantics<arbitrary>], iteration_bounds = array<i64: 1>, scalar_prefetch = 0 : i64, scratch_operands = 2 : i64, tpu.core_type = #tpu.core_type<tc>, window_params = [{pipeline_mode = #tpu.pipeline_mode<synchronous>, transform_indices = @transform_0, window_bounds = array<i64: 2, 4, 256>}, {pipeline_mode = #tpu.pipeline_mode<synchronous>, transform_indices = @transform_1, window_bounds = array<i64: 8, 72>}, {pipeline_mode = #tpu.pipeline_mode<synchronous>, transform_indices = @transform_2, window_bounds = array<i64: 8, 1>}, {pipeline_mode = #tpu.pipeline_mode<synchronous>, transform_indices = @transform_3, window_bounds = array<i64: 3, 256>}, {pipeline_mode = #tpu.pipeline_mode<synchronous>, transform_indices = @transform_4, window_bounds = array<i64: 2, 8, 256>}]} {
    %cst = arith.constant 0.000000e+00 : f32
    %0 = vector.broadcast %cst : f32 to vector<8x512xf32>
    %c0 = arith.constant 0 : index
    %c0_0 = arith.constant 0 : index
    %1 = vector.load %arg6[%c0, %c0_0] : memref<8x512xf32, #tpu.memory_space<vmem>>, vector<8x512xf32>
    tpu.vector_store %arg6[%c0, %c0_0], %0 {strides = array<i32>} : memref<8x512xf32, #tpu.memory_space<vmem>>, vector<8x512xf32>,
    %c0_1 = arith.constant 0 : index
    %c0_2 = arith.constant 0 : index
    %c0_3 = arith.constant 0 : index
    %2 = vector.load %arg1[%c0_1, %c0_2, %c0_3] : memref<2x4x256xf32, #tpu.memory_space<vmem>>, vector<1x4x256xf32>
    %3 = vector.shape_cast %2 : vector<1x4x256xf32> to vector<4x256xf32>
    %c0_4 = arith.constant 0 : index
    %c128 = arith.constant 128 : index
    %4 = vector.load %arg6[%c0_4, %c128] : memref<8x512xf32, #tpu.memory_space<vmem>>, vector<4x256xf32>
    tpu.vector_store %arg6[%c0_4, %c128], %3 {strides = array<i32>} : memref<8x512xf32, #tpu.memory_space<vmem>>, vector<4x256xf32>,
    %c0_5 = arith.constant 0 : index
    %c111 = arith.constant 111 : index
    %5 = vector.load %arg6[%c0_5, %c111] : memref<8x512xf32, #tpu.memory_space<vmem>>, vector<8x256xf32>
    %c0_6 = arith.constant 0 : index
    %c0_7 = arith.constant 0 : index
    %6 = vector.load %arg4[%c0_6, %c0_7] : memref<3x256xf32, #tpu.memory_space<vmem>>, vector<1x256xf32>
    %7 = vector.broadcast %6 : vector<1x256xf32> to vector<8x256xf32>
    %8 = arith.mulf %5, %7 : vector<8x256xf32>
    %c0_8 = arith.constant 0 : index
    %c0_9 = arith.constant 0 : index
    %9 = vector.load %arg7[%c0_8, %c0_9] : memref<72x512xf32, #tpu.memory_space<vmem>>, vector<8x256xf32>
    tpu.vector_store %arg7[%c0_8, %c0_9], %8 {strides = array<i32>} : memref<72x512xf32, #tpu.memory_space<vmem>>, vector<8x256xf32>,
    %c0_10 = arith.constant 0 : index
    %c112 = arith.constant 112 : index
    %10 = vector.load %arg6[%c0_10, %c112] : memref<8x512xf32, #tpu.memory_space<vmem>>, vector<8x256xf32>
    %c8 = arith.constant 8 : index
    %c0_11 = arith.constant 0 : index
    %11 = vector.load %arg7[%c8, %c0_11] : memref<72x512xf32, #tpu.memory_space<vmem>>, vector<8x256xf32>
    tpu.vector_store %arg7[%c8, %c0_11], %10 {strides = array<i32>} : memref<72x512xf32, #tpu.memory_space<vmem>>, vector<8x256xf32>,
    %c0_12 = arith.constant 0 : index
    %c113 = arith.constant 113 : index
    %12 = vector.load %arg6[%c0_12, %c113] : memref<8x512xf32, #tpu.memory_space<vmem>>, vector<8x256xf32>
    %c2 = arith.constant 2 : index
    %c0_13 = arith.constant 0 : index
    %13 = vector.load %arg4[%c2, %c0_13] : memref<3x256xf32, #tpu.memory_space<vmem>>, vector<1x256xf32>
    %14 = vector.broadcast %13 : vector<1x256xf32> to vector<8x256xf32>
    %15 = arith.mulf %12, %14 : vector<8x256xf32>
    %c16 = arith.constant 16 : index
    %c0_14 = arith.constant 0 : index
    %16 = vector.load %arg7[%c16, %c0_14] : memref<72x512xf32, #tpu.memory_space<vmem>>, vector<8x256xf32>
    tpu.vector_store %arg7[%c16, %c0_14], %15 {strides = array<i32>} : memref<72x512xf32, #tpu.memory_space<vmem>>, vector<8x256xf32>,
    %c0_15 = arith.constant 0 : index
    %c127 = arith.constant 127 : index
    %17 = vector.load %arg6[%c0_15, %c127] : memref<8x512xf32, #tpu.memory_space<vmem>>, vector<8x256xf32>
    %c0_16 = arith.constant 0 : index
    %c0_17 = arith.constant 0 : index
    %18 = vector.load %arg4[%c0_16, %c0_17] : memref<3x256xf32, #tpu.memory_space<vmem>>, vector<1x256xf32>
    %19 = vector.broadcast %18 : vector<1x256xf32> to vector<8x256xf32>
    %20 = arith.mulf %17, %19 : vector<8x256xf32>
    %c24 = arith.constant 24 : index
    %c0_18 = arith.constant 0 : index
    %21 = vector.load %arg7[%c24, %c0_18] : memref<72x512xf32, #tpu.memory_space<vmem>>, vector<8x256xf32>
    tpu.vector_store %arg7[%c24, %c0_18], %20 {strides = array<i32>} : memref<72x512xf32, #tpu.memory_space<vmem>>, vector<8x256xf32>,
    %c0_19 = arith.constant 0 : index
    %c128_20 = arith.constant 128 : index
    %22 = vector.load %arg6[%c0_19, %c128_20] : memref<8x512xf32, #tpu.memory_space<vmem>>, vector<8x256xf32>
    %c32 = arith.constant 32 : index
    %c0_21 = arith.constant 0 : index
    %23 = vector.load %arg7[%c32, %c0_21] : memref<72x512xf32, #tpu.memory_space<vmem>>, vector<8x256xf32>
    tpu.vector_store %arg7[%c32, %c0_21], %22 {strides = array<i32>} : memref<72x512xf32, #tpu.memory_space<vmem>>, vector<8x256xf32>,
    %c0_22 = arith.constant 0 : index
    %c129 = arith.constant 129 : index
    %24 = vector.load %arg6[%c0_22, %c129] : memref<8x512xf32, #tpu.memory_space<vmem>>, vector<8x256xf32>
    %c2_23 = arith.constant 2 : index
    %c0_24 = arith.constant 0 : index
    %25 = vector.load %arg4[%c2_23, %c0_24] : memref<3x256xf32, #tpu.memory_space<vmem>>, vector<1x256xf32>
    %26 = vector.broadcast %25 : vector<1x256xf32> to vector<8x256xf32>
    %27 = arith.mulf %24, %26 : vector<8x256xf32>
    %c40 = arith.constant 40 : index
    %c0_25 = arith.constant 0 : index
    %28 = vector.load %arg7[%c40, %c0_25] : memref<72x512xf32, #tpu.memory_space<vmem>>, vector<8x256xf32>
    tpu.vector_store %arg7[%c40, %c0_25], %27 {strides = array<i32>} : memref<72x512xf32, #tpu.memory_space<vmem>>, vector<8x256xf32>,
    %c0_26 = arith.constant 0 : index
    %c143 = arith.constant 143 : index
    %29 = vector.load %arg6[%c0_26, %c143] : memref<8x512xf32, #tpu.memory_space<vmem>>, vector<8x256xf32>
    %c0_27 = arith.constant 0 : index
    %c0_28 = arith.constant 0 : index
    %30 = vector.load %arg4[%c0_27, %c0_28] : memref<3x256xf32, #tpu.memory_space<vmem>>, vector<1x256xf32>
    %31 = vector.broadcast %30 : vector<1x256xf32> to vector<8x256xf32>
    %32 = arith.mulf %29, %31 : vector<8x256xf32>
    %c48 = arith.constant 48 : index
    %c0_29 = arith.constant 0 : index
    %33 = vector.load %arg7[%c48, %c0_29] : memref<72x512xf32, #tpu.memory_space<vmem>>, vector<8x256xf32>
    tpu.vector_store %arg7[%c48, %c0_29], %32 {strides = array<i32>} : memref<72x512xf32, #tpu.memory_space<vmem>>, vector<8x256xf32>,
    %c0_30 = arith.constant 0 : index
    %c144 = arith.constant 144 : index
    %34 = vector.load %arg6[%c0_30, %c144] : memref<8x512xf32, #tpu.memory_space<vmem>>, vector<8x256xf32>
    %c56 = arith.constant 56 : index
    %c0_31 = arith.constant 0 : index
    %35 = vector.load %arg7[%c56, %c0_31] : memref<72x512xf32, #tpu.memory_space<vmem>>, vector<8x256xf32>
    tpu.vector_store %arg7[%c56, %c0_31], %34 {strides = array<i32>} : memref<72x512xf32, #tpu.memory_space<vmem>>, vector<8x256xf32>,
    %c0_32 = arith.constant 0 : index
    %c145 = arith.constant 145 : index
    %36 = vector.load %arg6[%c0_32, %c145] : memref<8x512xf32, #tpu.memory_space<vmem>>, vector<8x256xf32>
    %c2_33 = arith.constant 2 : index
    %c0_34 = arith.constant 0 : index
    %37 = vector.load %arg4[%c2_33, %c0_34] : memref<3x256xf32, #tpu.memory_space<vmem>>, vector<1x256xf32>
    %38 = vector.broadcast %37 : vector<1x256xf32> to vector<8x256xf32>
    %39 = arith.mulf %36, %38 : vector<8x256xf32>
    %c64 = arith.constant 64 : index
    %c0_35 = arith.constant 0 : index
    %40 = vector.load %arg7[%c64, %c0_35] : memref<72x512xf32, #tpu.memory_space<vmem>>, vector<8x256xf32>
    tpu.vector_store %arg7[%c64, %c0_35], %39 {strides = array<i32>} : memref<72x512xf32, #tpu.memory_space<vmem>>, vector<8x256xf32>,
    %c1 = arith.constant 1 : index
    %c0_36 = arith.constant 0 : index
    %c0_37 = arith.constant 0 : index
    %41 = vector.load %arg1[%c1, %c0_36, %c0_37] : memref<2x4x256xf32, #tpu.memory_space<vmem>>, vector<1x4x256xf32>
    %42 = vector.shape_cast %41 : vector<1x4x256xf32> to vector<4x256xf32>
    %c0_38 = arith.constant 0 : index
    %c128_39 = arith.constant 128 : index
    %43 = vector.load %arg6[%c0_38, %c128_39] : memref<8x512xf32, #tpu.memory_space<vmem>>, vector<4x256xf32>
    tpu.vector_store %arg6[%c0_38, %c128_39], %42 {strides = array<i32>} : memref<8x512xf32, #tpu.memory_space<vmem>>, vector<4x256xf32>,
    %c0_40 = arith.constant 0 : index
    %c111_41 = arith.constant 111 : index
    %44 = vector.load %arg6[%c0_40, %c111_41] : memref<8x512xf32, #tpu.memory_space<vmem>>, vector<8x256xf32>
    %c0_42 = arith.constant 0 : index
    %c0_43 = arith.constant 0 : index
    %45 = vector.load %arg4[%c0_42, %c0_43] : memref<3x256xf32, #tpu.memory_space<vmem>>, vector<1x256xf32>
    %46 = vector.broadcast %45 : vector<1x256xf32> to vector<8x256xf32>
    %47 = arith.mulf %44, %46 : vector<8x256xf32>
    %c0_44 = arith.constant 0 : index
    %c256 = arith.constant 256 : index
    %48 = vector.load %arg7[%c0_44, %c256] : memref<72x512xf32, #tpu.memory_space<vmem>>, vector<8x256xf32>
    tpu.vector_store %arg7[%c0_44, %c256], %47 {strides = array<i32>} : memref<72x512xf32, #tpu.memory_space<vmem>>, vector<8x256xf32>,
    %c0_45 = arith.constant 0 : index
    %c112_46 = arith.constant 112 : index
    %49 = vector.load %arg6[%c0_45, %c112_46] : memref<8x512xf32, #tpu.memory_space<vmem>>, vector<8x256xf32>
    %c8_47 = arith.constant 8 : index
    %c256_48 = arith.constant 256 : index
    %50 = vector.load %arg7[%c8_47, %c256_48] : memref<72x512xf32, #tpu.memory_space<vmem>>, vector<8x256xf32>
    tpu.vector_store %arg7[%c8_47, %c256_48], %49 {strides = array<i32>} : memref<72x512xf32, #tpu.memory_space<vmem>>, vector<8x256xf32>,
    %c0_49 = arith.constant 0 : index
    %c113_50 = arith.constant 113 : index
    %51 = vector.load %arg6[%c0_49, %c113_50] : memref<8x512xf32, #tpu.memory_space<vmem>>, vector<8x256xf32>
    %c2_51 = arith.constant 2 : index
    %c0_52 = arith.constant 0 : index
    %52 = vector.load %arg4[%c2_51, %c0_52] : memref<3x256xf32, #tpu.memory_space<vmem>>, vector<1x256xf32>
    %53 = vector.broadcast %52 : vector<1x256xf32> to vector<8x256xf32>
    %54 = arith.mulf %51, %53 : vector<8x256xf32>
    %c16_53 = arith.constant 16 : index
    %c256_54 = arith.constant 256 : index
    %55 = vector.load %arg7[%c16_53, %c256_54] : memref<72x512xf32, #tpu.memory_space<vmem>>, vector<8x256xf32>
    tpu.vector_store %arg7[%c16_53, %c256_54], %54 {strides = array<i32>} : memref<72x512xf32, #tpu.memory_space<vmem>>, vector<8x256xf32>,
    %c0_55 = arith.constant 0 : index
    %c127_56 = arith.constant 127 : index
    %56 = vector.load %arg6[%c0_55, %c127_56] : memref<8x512xf32, #tpu.memory_space<vmem>>, vector<8x256xf32>
    %c0_57 = arith.constant 0 : index
    %c0_58 = arith.constant 0 : index
    %57 = vector.load %arg4[%c0_57, %c0_58] : memref<3x256xf32, #tpu.memory_space<vmem>>, vector<1x256xf32>
    %58 = vector.broadcast %57 : vector<1x256xf32> to vector<8x256xf32>
    %59 = arith.mulf %56, %58 : vector<8x256xf32>
    %c24_59 = arith.constant 24 : index
    %c256_60 = arith.constant 256 : index
    %60 = vector.load %arg7[%c24_59, %c256_60] : memref<72x512xf32, #tpu.memory_space<vmem>>, vector<8x256xf32>
    tpu.vector_store %arg7[%c24_59, %c256_60], %59 {strides = array<i32>} : memref<72x512xf32, #tpu.memory_space<vmem>>, vector<8x256xf32>,
    %c0_61 = arith.constant 0 : index
    %c128_62 = arith.constant 128 : index
    %61 = vector.load %arg6[%c0_61, %c128_62] : memref<8x512xf32, #tpu.memory_space<vmem>>, vector<8x256xf32>
    %c32_63 = arith.constant 32 : index
    %c256_64 = arith.constant 256 : index
    %62 = vector.load %arg7[%c32_63, %c256_64] : memref<72x512xf32, #tpu.memory_space<vmem>>, vector<8x256xf32>
    tpu.vector_store %arg7[%c32_63, %c256_64], %61 {strides = array<i32>} : memref<72x512xf32, #tpu.memory_space<vmem>>, vector<8x256xf32>,
    %c0_65 = arith.constant 0 : index
    %c129_66 = arith.constant 129 : index
    %63 = vector.load %arg6[%c0_65, %c129_66] : memref<8x512xf32, #tpu.memory_space<vmem>>, vector<8x256xf32>
    %c2_67 = arith.constant 2 : index
    %c0_68 = arith.constant 0 : index
    %64 = vector.load %arg4[%c2_67, %c0_68] : memref<3x256xf32, #tpu.memory_space<vmem>>, vector<1x256xf32>
    %65 = vector.broadcast %64 : vector<1x256xf32> to vector<8x256xf32>
    %66 = arith.mulf %63, %65 : vector<8x256xf32>
    %c40_69 = arith.constant 40 : index
    %c256_70 = arith.constant 256 : index
    %67 = vector.load %arg7[%c40_69, %c256_70] : memref<72x512xf32, #tpu.memory_space<vmem>>, vector<8x256xf32>
    tpu.vector_store %arg7[%c40_69, %c256_70], %66 {strides = array<i32>} : memref<72x512xf32, #tpu.memory_space<vmem>>, vector<8x256xf32>,
    %c0_71 = arith.constant 0 : index
    %c143_72 = arith.constant 143 : index
    %68 = vector.load %arg6[%c0_71, %c143_72] : memref<8x512xf32, #tpu.memory_space<vmem>>, vector<8x256xf32>
    %c0_73 = arith.constant 0 : index
    %c0_74 = arith.constant 0 : index
    %69 = vector.load %arg4[%c0_73, %c0_74] : memref<3x256xf32, #tpu.memory_space<vmem>>, vector<1x256xf32>
    %70 = vector.broadcast %69 : vector<1x256xf32> to vector<8x256xf32>
    %71 = arith.mulf %68, %70 : vector<8x256xf32>
    %c48_75 = arith.constant 48 : index
    %c256_76 = arith.constant 256 : index
    %72 = vector.load %arg7[%c48_75, %c256_76] : memref<72x512xf32, #tpu.memory_space<vmem>>, vector<8x256xf32>
    tpu.vector_store %arg7[%c48_75, %c256_76], %71 {strides = array<i32>} : memref<72x512xf32, #tpu.memory_space<vmem>>, vector<8x256xf32>,
    %c0_77 = arith.constant 0 : index
    %c144_78 = arith.constant 144 : index
    %73 = vector.load %arg6[%c0_77, %c144_78] : memref<8x512xf32, #tpu.memory_space<vmem>>, vector<8x256xf32>
    %c56_79 = arith.constant 56 : index
    %c256_80 = arith.constant 256 : index
    %74 = vector.load %arg7[%c56_79, %c256_80] : memref<72x512xf32, #tpu.memory_space<vmem>>, vector<8x256xf32>
    tpu.vector_store %arg7[%c56_79, %c256_80], %73 {strides = array<i32>} : memref<72x512xf32, #tpu.memory_space<vmem>>, vector<8x256xf32>,
    %c0_81 = arith.constant 0 : index
    %c145_82 = arith.constant 145 : index
    %75 = vector.load %arg6[%c0_81, %c145_82] : memref<8x512xf32, #tpu.memory_space<vmem>>, vector<8x256xf32>
    %c2_83 = arith.constant 2 : index
    %c0_84 = arith.constant 0 : index
    %76 = vector.load %arg4[%c2_83, %c0_84] : memref<3x256xf32, #tpu.memory_space<vmem>>, vector<1x256xf32>
    %77 = vector.broadcast %76 : vector<1x256xf32> to vector<8x256xf32>
    %78 = arith.mulf %75, %77 : vector<8x256xf32>
    %c64_85 = arith.constant 64 : index
    %c256_86 = arith.constant 256 : index
    %79 = vector.load %arg7[%c64_85, %c256_86] : memref<72x512xf32, #tpu.memory_space<vmem>>, vector<8x256xf32>
    tpu.vector_store %arg7[%c64_85, %c256_86], %78 {strides = array<i32>} : memref<72x512xf32, #tpu.memory_space<vmem>>, vector<8x256xf32>,
    %c0_87 = arith.constant 0 : index
    %c0_88 = arith.constant 0 : index
    %80 = vector.load %arg2[%c0_87, %c0_88] : memref<8x72xf32, #tpu.memory_space<vmem>>, vector<8x72xf32>
    %c0_89 = arith.constant 0 : index
    %c0_90 = arith.constant 0 : index
    %81 = vector.load %arg7[%c0_89, %c0_90] : memref<72x512xf32, #tpu.memory_space<vmem>>, vector<72x512xf32>
    %cst_91 = arith.constant dense<0.000000e+00> : vector<8x512xf32>
    %82 = tpu.matmul %80, %81, %cst_91 {dimension_numbers = #tpu.dot_dimension_numbers<[1], [0], [0], [1], [0, 0, 1, 1], [], []>} : vector<8x72xf32>, vector<72x512xf32>, vector<8x512xf32> -> vector<8x512xf32>
    %c0_92 = arith.constant 0 : index
    %c0_93 = arith.constant 0 : index
    %83 = vector.load %arg3[%c0_92, %c0_93] : memref<8x1xf32, #tpu.memory_space<vmem>>, vector<8x1xf32>
    %84 = vector.broadcast %83 : vector<8x1xf32> to vector<8x512xf32>
    %85 = arith.addf %82, %84 : vector<8x512xf32>
    %cst_94 = arith.constant 0.000000e+00 : f32
    %86 = vector.broadcast %cst_94 : f32 to vector<8x512xf32>
    %87 = arith.maximumf %85, %86 : vector<8x512xf32>
    %88 = vector.extract_strided_slice %87 {offsets = [0, 0], sizes = [8, 256], strides = [1, 1]} : vector<8x512xf32> to vector<8x256xf32>
    %c0_95 = arith.constant 0 : index
    %c0_96 = arith.constant 0 : index
    %c0_97 = arith.constant 0 : index
    %89 = vector.load %arg5[%c0_95, %c0_96, %c0_97] : memref<2x8x256xf32, #tpu.memory_space<vmem>>, vector<1x8x256xf32>
    %90 = vector.shape_cast %89 : vector<1x8x256xf32> to vector<8x256xf32>
    %91 = vector.shape_cast %88 : vector<8x256xf32> to vector<1x8x256xf32>
    tpu.vector_store %arg5[%c0_95, %c0_96, %c0_97], %91 {strides = array<i32>} : memref<2x8x256xf32, #tpu.memory_space<vmem>>, vector<1x8x256xf32>,
    %92 = vector.extract_strided_slice %87 {offsets = [0, 256], sizes = [8, 256], strides = [1, 1]} : vector<8x512xf32> to vector<8x256xf32>
    %c1_98 = arith.constant 1 : index
    %c0_99 = arith.constant 0 : index
    %c0_100 = arith.constant 0 : index
    %93 = vector.load %arg5[%c1_98, %c0_99, %c0_100] : memref<2x8x256xf32, #tpu.memory_space<vmem>>, vector<1x8x256xf32>
    %94 = vector.shape_cast %93 : vector<1x8x256xf32> to vector<8x256xf32>
    %95 = vector.shape_cast %92 : vector<8x256xf32> to vector<1x8x256xf32>
    tpu.vector_store %arg5[%c1_98, %c0_99, %c0_100], %95 {strides = array<i32>} : memref<2x8x256xf32, #tpu.memory_space<vmem>>, vector<1x8x256xf32>,
    return
  }
  func.func @transform_0(%arg0: i32) -> (i32, i32, i32) {
    %c0_i32 = arith.constant 0 : i32
    %c0_i32_0 = arith.constant 0 : i32
    %c0_i32_1 = arith.constant 0 : i32
    %c0_i32_2 = arith.constant 0 : i32
    return %c0_i32, %c0_i32_0, %c0_i32_1 : i32, i32, i32
  }
  func.func @transform_1(%arg0: i32) -> (i32, i32) {
    %c0_i32 = arith.constant 0 : i32
    %c0_i32_0 = arith.constant 0 : i32
    %c0_i32_1 = arith.constant 0 : i32
    return %c0_i32, %c0_i32_0 : i32, i32
  }
  func.func @transform_2(%arg0: i32) -> (i32, i32) {
    %c0_i32 = arith.constant 0 : i32
    %c0_i32_0 = arith.constant 0 : i32
    %c0_i32_1 = arith.constant 0 : i32
    return %c0_i32, %c0_i32_0 : i32, i32
  }
  func.func @transform_3(%arg0: i32) -> (i32, i32) {
    %c0_i32 = arith.constant 0 : i32
    %c0_i32_0 = arith.constant 0 : i32
    %c0_i32_1 = arith.constant 0 : i32
    return %c0_i32, %c0_i32_0 : i32, i32
  }
  func.func @transform_4(%arg0: i32) -> (i32, i32, i32) {
    %c0_i32 = arith.constant 0 : i32
    %c0_i32_0 = arith.constant 0 : i32
    %c0_i32_1 = arith.constant 0 : i32
    %c0_i32_2 = arith.constant 0 : i32
    return %c0_i32, %c0_i32_0, %c0_i32_1 : i32, i32, i32
  }
}

</mosaic_0001>

<llo_original>
// kernel: tpu_custom_call.1
$region0: #{tpu_custom_call.1}
  #allocation0 [shape = 'u32[]', space=smem, size = 0x4, offset = 0x4, fixed_abs, tag = 'smem constant byte address 0x4 - core index']
  #allocation1 [shape = 'u32[72,128]{1,0:T(1,128)}', space=vmem, size = 0x9000, scoped, tag = 'internal scratch']
  #allocation2 [shape = 'f32[8,512]{1,0:T(8,128)}', space=vmem, size = 0x4000, scoped, tag = 'scratch operand']
  #allocation3 [shape = 'f32[72,512]{1,0:T(8,128)}', space=vmem, size = 0x24000, scoped, tag = 'scratch operand']
  %s0 = inlined_call_operand.hbm [shape: f32[2,4,256], index: 0, kind: input, shape index: {}]
  %s1 = inlined_call_operand.vmem [shape: f32[8,72], index: 1, kind: input, shape index: {}]
  %s2 = inlined_call_operand.vmem [shape: f32[8,1], index: 2, kind: input, shape index: {}]
  %s3 = inlined_call_operand.hbm [shape: f32[3,256], index: 3, kind: input, shape index: {}]
  %s4 = inlined_call_operand.hbm [shape: f32[2,8,256], index: 4, kind: output, shape index: {}]
  %s5 = sld [smem:[#allocation0]]
  $region34: #{tpu_custom_call.1} parent=0
    _
  %s7 = ssub.s32 1, %s5
  %s8 = scalar_select 0, %s7, %s5
  $region1: #{tpu_custom_call.1} parent=0
    #allocation4 [shape = 'u8[8192]{0}', space=vmem, size = 0x2000, scoped, tag = 'input window, operand 0, single buffered']
    #allocation5 [shape = 's32[1]{0}', space=sflag, size = 0x4, scoped, tag = 'scoped memory for tpu_custom_call.1']
    #allocation6 [shape = 's32[1]{0}', space=sflag, size = 0x4, scoped, tag = 'scoped memory for tpu_custom_call.1']
    #allocation7 [shape = 'u8[4096]{0}', space=vmem, size = 0x1000, scoped, tag = 'input window, operand 3, single buffered']
    #allocation8 [shape = 's32[1]{0}', space=sflag, size = 0x4, scoped, tag = 'scoped memory for tpu_custom_call.1']
    #allocation9 [shape = 'u8[16384]{0}', space=vmem, size = 0x4000, scoped, tag = 'output window, operand 0, single buffered']
    %9 = vsyncpa [#allocation5], 0
    %10 = vsyncpa [#allocation8], 0
    %11 = vsyncpa [#allocation6], 0
    // Predicated region
    $region2: #{tpu_custom_call.1} parent=1 // pred_check
      _
    $region3: #{tpu_custom_call.1} parent=1 // pred_check_branch
      %13 = sbr.rel (0) target = $region5
    $region4: #{tpu_custom_call.1} parent=1 // pred_region
      %15 = vsyncadd [#allocation5], 0
      %s16 = sshll.u32 %s0, 4
      %s17 = int_to_ptr.hbm [resolvable:$true] %s16
      %s18 = sshll.u32 [#allocation4], 4
      %s19 = int_to_ptr.vmem [resolvable:$true] %s18
      %24 = dma.hbm_to_vmem [thread:$0]  %s17, 256, %s19, [#allocation5], 128, 128, 8
    $region5: #{tpu_custom_call.1} parent=1 // pred_fallthru
      _
    // Predicated region
    $region6: #{tpu_custom_call.1} parent=1 // pred_check
      _
    $region7: #{tpu_custom_call.1} parent=1 // pred_check_branch
      %26 = sbr.rel (0) target = $region9
    $region8: #{tpu_custom_call.1} parent=1 // pred_region
      _
    $region9: #{tpu_custom_call.1} parent=1 // pred_fallthru
      _
    // Predicated region
    $region10: #{tpu_custom_call.1} parent=1 // pred_check
      _
    $region11: #{tpu_custom_call.1} parent=1 // pred_check_branch
      %28 = sbr.rel (0) target = $region13
    $region12: #{tpu_custom_call.1} parent=1 // pred_region
      _
    $region13: #{tpu_custom_call.1} parent=1 // pred_fallthru
      _
    // Predicated region
    $region14: #{tpu_custom_call.1} parent=1 // pred_check
      _
    $region15: #{tpu_custom_call.1} parent=1 // pred_check_branch
      %30 = sbr.rel (0) target = $region17
    $region16: #{tpu_custom_call.1} parent=1 // pred_region
      %32 = vsyncadd [#allocation8], 0
      %s34 = sshll.u32 %s3, 4
      %s35 = int_to_ptr.hbm [resolvable:$true] %s34
      %s36 = sshll.u32 [#allocation7], 4
      %s37 = int_to_ptr.vmem [resolvable:$true] %s36
      %39 = dma.hbm_to_vmem [thread:$0]  %s35, 128, %s37, [#allocation8]
    $region17: #{tpu_custom_call.1} parent=1 // pred_fallthru
      _
    // Predicated region
    $region18: #{tpu_custom_call.1} parent=1 // pred_check
      _
    $region19: #{tpu_custom_call.1} parent=1 // pred_check_branch
      %41 = sbr.rel (0) target = $region21
    $region20: #{tpu_custom_call.1} parent=1 // pred_region
      %43 = dma.done [#allocation5], 256
    $region21: #{tpu_custom_call.1} parent=1 // pred_fallthru
      _
    // Predicated region
    $region22: #{tpu_custom_call.1} parent=1 // pred_check
      _
    $region23: #{tpu_custom_call.1} parent=1 // pred_check_branch
      %45 = sbr.rel (0) target = $region25
    $region24: #{tpu_custom_call.1} parent=1 // pred_region
      %47 = dma.done [#allocation8], 128
    $region25: #{tpu_custom_call.1} parent=1 // pred_fallthru
      _
    %48 = vst [vmem:[#allocation2] sm:$0xff] 0.0
    %49 = vst [vmem:[#allocation2 + $0x8] sm:$0xff] 0.0
    %50 = vst [vmem:[#allocation2 + $0x10] sm:$0xff] 0.0
    %51 = vst [vmem:[#allocation2 + $0x18] sm:$0xff] 0.0
    %v52 = vld [vmem:[#allocation4] sm:$0xff]
    %54 = vst [vmem:[#allocation1] ss:$2 sm:$0xff] %v52
    %v55 = vld.sshfl [vmem:[#allocation1] sm:$0xff pattern:$0x75316420]
    %v56 = vld.sshfl [vmem:[#allocation1 + $0x8] sm:$0xff pattern:$0x75316420]
    %59 = vst [vmem:[#allocation2 + $0x8] sm:$0xf] %v55
    %60 = vst [vmem:[#allocation2 + $0x10] sm:$0xf] %v56
    %v61 = vld [vmem:[#allocation2] sm:$0xff]
    %v62 = vld [vmem:[#allocation2 + $0x8] sm:$0xff]
    %v63 = vld [vmem:[#allocation2 + $0x10] sm:$0xff]
    %v64 = vld [vmem:[#allocation7] ss:$4 sm:$0x3]
    %v66 = vperm.slane %v64, 0
    %v67 = vperm.slane %v64, 1
    %68 = vrot.lane.b32.xlu0 %v66, 111
    %v69 = vpop.permute.xlu0 %68
    %70 = vrot.lane.b32.xlu0 %v67, 111
    %v71 = vpop.permute.xlu0 %70
    %vm72 = vcmask 908288
    %v73 = vsel %vm72, %v69, %v71
    %v77 = vmul.f32 %v61, %v69
    %v78 = vmul.f32 %v62, %v73
    %v79 = vmul.f32 %v63, %v71
    %83 = vrot.lane.b32.xlu0 %v77, 17
    %v84 = vpop.permute.xlu0 %83
    %85 = vrot.lane.b32.xlu0 %v78, 17
    %v86 = vpop.permute.xlu0 %85
    %87 = vrot.lane.b32.xlu0 %v79, 17
    %v88 = vpop.permute.xlu0 %87
    %vm89 = vcmask 138240
    %v90 = vsel %vm89, %v84, %v86
    %v91 = vsel %vm89, %v86, %v88
    %94 = vst [vmem:[#allocation3] sm:$0xff] %v90
    %95 = vst [vmem:[#allocation3 + $0x8] sm:$0xff] %v91
    %v96 = vld [vmem:[#allocation2] sm:$0xff]
    %v97 = vld [vmem:[#allocation2 + $0x8] sm:$0xff]
    %v98 = vld [vmem:[#allocation2 + $0x10] sm:$0xff]
    %102 = vrot.lane.b32.xlu0 %v96, 16
    %v103 = vpop.permute.xlu0 %102
    %104 = vrot.lane.b32.xlu0 %v97, 16
    %v105 = vpop.permute.xlu0 %104
    %106 = vrot.lane.b32.xlu0 %v98, 16
    %v107 = vpop.permute.xlu0 %106
    %vm108 = vcmask 130048
    %v109 = vsel %vm108, %v103, %v105
    %v110 = vsel %vm108, %v105, %v107
    %113 = vst [vmem:[#allocation3 + $0x20] sm:$0xff] %v109
    %114 = vst [vmem:[#allocation3 + $0x28] sm:$0xff] %v110
    %v115 = vld [vmem:[#allocation2] sm:$0xff]
    %v116 = vld [vmem:[#allocation2 + $0x8] sm:$0xff]
    %v117 = vld [vmem:[#allocation2 + $0x10] sm:$0xff]
    %s118 = scalar_lea.vmem [#allocation7], 2
    %v119 = vld [vmem:[%s118] ss:$4 sm:$0x3]
    %v121 = vperm.slane %v119, 0
    %v122 = vperm.slane %v119, 1
    %123 = vrot.lane.b32.xlu0 %v121, 113
    %v124 = vpop.permute.xlu0 %123
    %125 = vrot.lane.b32.xlu0 %v122, 113
    %v126 = vpop.permute.xlu0 %125
    %vm127 = vcmask 924672
    %v128 = vsel %vm127, %v124, %v126
    %v132 = vmul.f32 %v115, %v124
    %v133 = vmul.f32 %v116, %v128
    %v134 = vmul.f32 %v117, %v126
    %138 = vrot.lane.b32.xlu0 %v132, 15
    %v139 = vpop.permute.xlu0 %138
    %140 = vrot.lane.b32.xlu0 %v133, 15
    %v141 = vpop.permute.xlu0 %140
    %142 = vrot.lane.b32.xlu0 %v134, 15
    %v143 = vpop.permute.xlu0 %142
    %vm144 = vcmask 121856
    %v145 = vsel %vm144, %v139, %v141
    %v146 = vsel %vm144, %v141, %v143
    %149 = vst [vmem:[#allocation3 + $0x40] sm:$0xff] %v145
    %150 = vst [vmem:[#allocation3 + $0x48] sm:$0xff] %v146
    %v151 = vld [vmem:[#allocation2] sm:$0xff]
    %v152 = vld [vmem:[#allocation2 + $0x8] sm:$0xff]
    %v153 = vld [vmem:[#allocation2 + $0x10] sm:$0xff]
    %v154 = vld [vmem:[#allocation7] ss:$4 sm:$0x3]
    %v156 = vperm.slane %v154, 0
    %v157 = vperm.slane %v154, 1
    %158 = vrot.lane.b32.xlu0 %v156, 127
    %v159 = vpop.permute.xlu0 %158
    %160 = vrot.lane.b32.xlu0 %v157, 127
    %v161 = vpop.permute.xlu0 %160
    %vm162 = vcmask 1039360
    %v163 = vsel %vm162, %v159, %v161
    %v167 = vmul.f32 %v151, %v159
    %v168 = vmul.f32 %v152, %v163
    %v169 = vmul.f32 %v153, %v161
    %173 = vrot.lane.b32.xlu0 %v167, 1
    %v174 = vpop.permute.xlu0 %173
    %175 = vrot.lane.b32.xlu0 %v168, 1
    %v176 = vpop.permute.xlu0 %175
    %177 = vrot.lane.b32.xlu0 %v169, 1
    %v178 = vpop.permute.xlu0 %177
    %vm179 = vcmask 7168
    %v180 = vsel %vm179, %v174, %v176
    %v181 = vsel %vm179, %v176, %v178
    %184 = vst [vmem:[#allocation3 + $0x60] sm:$0xff] %v180
    %185 = vst [vmem:[#allocation3 + $0x68] sm:$0xff] %v181
    %v186 = vld [vmem:[#allocation2 + $0x8] sm:$0xff]
    %v187 = vld [vmem:[#allocation2 + $0x10] sm:$0xff]
    %188 = vst [vmem:[#allocation3 + $0x80] sm:$0xff] %v186
    %189 = vst [vmem:[#allocation3 + $0x88] sm:$0xff] %v187
    %v190 = vld [vmem:[#allocation2 + $0x8] sm:$0xff]
    %v191 = vld [vmem:[#allocation2 + $0x10] sm:$0xff]
    %v192 = vld [vmem:[#allocation2 + $0x18] sm:$0xff]
    %v193 = vld [vmem:[%s118] ss:$4 sm:$0x3]
    %v195 = vperm.slane %v193, 0
    %v196 = vperm.slane %v193, 1
    %197 = vrot.lane.b32.xlu0 %v195, 1
    %v198 = vpop.permute.xlu0 %197
    %199 = vrot.lane.b32.xlu0 %v196, 1
    %v200 = vpop.permute.xlu0 %199
    %v201 = vsel %vm179, %v198, %v200
    %v205 = vmul.f32 %v190, %v198
    %v206 = vmul.f32 %v191, %v201
    %v207 = vmul.f32 %v192, %v200
    %211 = vrot.lane.b32.xlu0 %v205, 127
    %v212 = vpop.permute.xlu0 %211
    %213 = vrot.lane.b32.xlu0 %v206, 127
    %v214 = vpop.permute.xlu0 %213
    %215 = vrot.lane.b32.xlu0 %v207, 127
    %v216 = vpop.permute.xlu0 %215
    %v217 = vsel %vm162, %v212, %v214
    %v218 = vsel %vm162, %v214, %v216
    %221 = vst [vmem:[#allocation3 + $0xa0] sm:$0xff] %v217
    %222 = vst [vmem:[#allocation3 + $0xa8] sm:$0xff] %v218
    %v223 = vld [vmem:[#allocation2 + $0x8] sm:$0xff]
    %v224 = vld [vmem:[#allocation2 + $0x10] sm:$0xff]
    %v225 = vld [vmem:[#allocation2 + $0x18] sm:$0xff]
    %v226 = vld [vmem:[#allocation7] ss:$4 sm:$0x3]
    %v228 = vperm.slane %v226, 0
    %v229 = vperm.slane %v226, 1
    %230 = vrot.lane.b32.xlu0 %v228, 15
    %v231 = vpop.permute.xlu0 %230
    %232 = vrot.lane.b32.xlu0 %v229, 15
    %v233 = vpop.permute.xlu0 %232
    %v234 = vsel %vm144, %v231, %v233
    %v238 = vmul.f32 %v223, %v231
    %v239 = vmul.f32 %v224, %v234
    %v240 = vmul.f32 %v225, %v233
    %244 = vrot.lane.b32.xlu0 %v238, 113
    %v245 = vpop.permute.xlu0 %244
    %246 = vrot.lane.b32.xlu0 %v239, 113
    %v247 = vpop.permute.xlu0 %246
    %248 = vrot.lane.b32.xlu0 %v240, 113
    %v249 = vpop.permute.xlu0 %248
    %v250 = vsel %vm127, %v245, %v247
    %v251 = vsel %vm127, %v247, %v249
    %254 = vst [vmem:[#allocation3 + $0xc0] sm:$0xff] %v250
    %255 = vst [vmem:[#allocation3 + $0xc8] sm:$0xff] %v251
    %v256 = vld [vmem:[#allocation2 + $0x8] sm:$0xff]
    %v257 = vld [vmem:[#allocation2 + $0x10] sm:$0xff]
    %v258 = vld [vmem:[#allocation2 + $0x18] sm:$0xff]
    %262 = vrot.lane.b32.xlu0 %v256, 112
    %v263 = vpop.permute.xlu0 %262
    %264 = vrot.lane.b32.xlu0 %v257, 112
    %v265 = vpop.permute.xlu0 %264
    %266 = vrot.lane.b32.xlu0 %v258, 112
    %v267 = vpop.permute.xlu0 %266
    %vm268 = vcmask 916480
    %v269 = vsel %vm268, %v263, %v265
    %v270 = vsel %vm268, %v265, %v267
    %273 = vst [vmem:[#allocation3 + $0xe0] sm:$0xff] %v269
    %274 = vst [vmem:[#allocation3 + $0xe8] sm:$0xff] %v270
    %v275 = vld [vmem:[#allocation2 + $0x8] sm:$0xff]
    %v276 = vld [vmem:[#allocation2 + $0x10] sm:$0xff]
    %v277 = vld [vmem:[#allocation2 + $0x18] sm:$0xff]
    %v278 = vld [vmem:[%s118] ss:$4 sm:$0x3]
    %v280 = vperm.slane %v278, 0
    %v281 = vperm.slane %v278, 1
    %282 = vrot.lane.b32.xlu0 %v280, 17
    %v283 = vpop.permute.xlu0 %282
    %284 = vrot.lane.b32.xlu0 %v281, 17
    %v285 = vpop.permute.xlu0 %284
    %v286 = vsel %vm89, %v283, %v285
    %v290 = vmul.f32 %v275, %v283
    %v291 = vmul.f32 %v276, %v286
    %v292 = vmul.f32 %v277, %v285
    %296 = vrot.lane.b32.xlu0 %v290, 111
    %v297 = vpop.permute.xlu0 %296
    %298 = vrot.lane.b32.xlu0 %v291, 111
    %v299 = vpop.permute.xlu0 %298
    %300 = vrot.lane.b32.xlu0 %v292, 111
    %v301 = vpop.permute.xlu0 %300
    %v302 = vsel %vm72, %v297, %v299
    %v303 = vsel %vm72, %v299, %v301
    %306 = vst [vmem:[#allocation3 + $0x100] sm:$0xff] %v302
    %307 = vst [vmem:[#allocation3 + $0x108] sm:$0xff] %v303
    %s308 = scalar_lea.vmem [#allocation4], 8
    %v309 = vld [vmem:[%s308] sm:$0xff]
    %311 = vst [vmem:[#allocation1] ss:$2 sm:$0xff] %v309
    %v312 = vld.sshfl [vmem:[#allocation1] sm:$0xff pattern:$0x75316420]
    %v313 = vld.sshfl [vmem:[#allocation1 + $0x8] sm:$0xff pattern:$0x75316420]
    %316 = vst [vmem:[#allocation2 + $0x8] sm:$0xf] %v312
    %317 = vst [vmem:[#allocation2 + $0x10] sm:$0xf] %v313
    %v318 = vld [vmem:[#allocation2] sm:$0xff]
    %v319 = vld [vmem:[#allocation2 + $0x8] sm:$0xff]
    %v320 = vld [vmem:[#allocation2 + $0x10] sm:$0xff]
    %v321 = vld [vmem:[#allocation7] ss:$4 sm:$0x3]
    %v323 = vperm.slane %v321, 0
    %v324 = vperm.slane %v321, 1
    %325 = vrot.lane.b32.xlu0 %v323, 111
    %v326 = vpop.permute.xlu0 %325
    %327 = vrot.lane.b32.xlu0 %v324, 111
    %v328 = vpop.permute.xlu0 %327
    %v329 = vsel %vm72, %v326, %v328
    %v333 = vmul.f32 %v318, %v326
    %v334 = vmul.f32 %v319, %v329
    %v335 = vmul.f32 %v320, %v328
    %339 = vrot.lane.b32.xlu0 %v333, 17
    %v340 = vpop.permute.xlu0 %339
    %341 = vrot.lane.b32.xlu0 %v334, 17
    %v342 = vpop.permute.xlu0 %341
    %343 = vrot.lane.b32.xlu0 %v335, 17
    %v344 = vpop.permute.xlu0 %343
    %v345 = vsel %vm89, %v340, %v342
    %v346 = vsel %vm89, %v342, %v344
    %349 = vst [vmem:[#allocation3 + $0x10] sm:$0xff] %v345
    %350 = vst [vmem:[#allocation3 + $0x18] sm:$0xff] %v346
    %v351 = vld [vmem:[#allocation2] sm:$0xff]
    %v352 = vld [vmem:[#allocation2 + $0x8] sm:$0xff]
    %v353 = vld [vmem:[#allocation2 + $0x10] sm:$0xff]
    %357 = vrot.lane.b32.xlu0 %v351, 16
    %v358 = vpop.permute.xlu0 %357
    %359 = vrot.lane.b32.xlu0 %v352, 16
    %v360 = vpop.permute.xlu0 %359
    %361 = vrot.lane.b32.xlu0 %v353, 16
    %v362 = vpop.permute.xlu0 %361
    %v363 = vsel %vm108, %v358, %v360
    %v364 = vsel %vm108, %v360, %v362
    %367 = vst [vmem:[#allocation3 + $0x30] sm:$0xff] %v363
    %368 = vst [vmem:[#allocation3 + $0x38] sm:$0xff] %v364
    %v369 = vld [vmem:[#allocation2] sm:$0xff]
    %v370 = vld [vmem:[#allocation2 + $0x8] sm:$0xff]
    %v371 = vld [vmem:[#allocation2 + $0x10] sm:$0xff]
    %v372 = vld [vmem:[%s118] ss:$4 sm:$0x3]
    %v374 = vperm.slane %v372, 0
    %v375 = vperm.slane %v372, 1
    %376 = vrot.lane.b32.xlu0 %v374, 113
    %v377 = vpop.permute.xlu0 %376
    %378 = vrot.lane.b32.xlu0 %v375, 113
    %v379 = vpop.permute.xlu0 %378
    %v380 = vsel %vm127, %v377, %v379
    %v384 = vmul.f32 %v369, %v377
    %v385 = vmul.f32 %v370, %v380
    %v386 = vmul.f32 %v371, %v379
    %390 = vrot.lane.b32.xlu0 %v384, 15
    %v391 = vpop.permute.xlu0 %390
    %392 = vrot.lane.b32.xlu0 %v385, 15
    %v393 = vpop.permute.xlu0 %392
    %394 = vrot.lane.b32.xlu0 %v386, 15
    %v395 = vpop.permute.xlu0 %394
    %v396 = vsel %vm144, %v391, %v393
    %v397 = vsel %vm144, %v393, %v395
    %400 = vst [vmem:[#allocation3 + $0x50] sm:$0xff] %v396
    %401 = vst [vmem:[#allocation3 + $0x58] sm:$0xff] %v397
    %v402 = vld [vmem:[#allocation2] sm:$0xff]
    %v403 = vld [vmem:[#allocation2 + $0x8] sm:$0xff]
    %v404 = vld [vmem:[#allocation2 + $0x10] sm:$0xff]
    %v405 = vld [vmem:[#allocation7] ss:$4 sm:$0x3]
    %v407 = vperm.slane %v405, 0
    %v408 = vperm.slane %v405, 1
    %409 = vrot.lane.b32.xlu0 %v407, 127
    %v410 = vpop.permute.xlu0 %409
    %411 = vrot.lane.b32.xlu0 %v408, 127
    %v412 = vpop.permute.xlu0 %411
    %v413 = vsel %vm162, %v410, %v412
    %v417 = vmul.f32 %v402, %v410
    %v418 = vmul.f32 %v403, %v413
    %v419 = vmul.f32 %v404, %v412
    %423 = vrot.lane.b32.xlu0 %v417, 1
    %v424 = vpop.permute.xlu0 %423
    %425 = vrot.lane.b32.xlu0 %v418, 1
    %v426 = vpop.permute.xlu0 %425
    %427 = vrot.lane.b32.xlu0 %v419, 1
    %v428 = vpop.permute.xlu0 %427
    %v429 = vsel %vm179, %v424, %v426
    %v430 = vsel %vm179, %v426, %v428
    %433 = vst [vmem:[#allocation3 + $0x70] sm:$0xff] %v429
    %434 = vst [vmem:[#allocation3 + $0x78] sm:$0xff] %v430
    %v435 = vld [vmem:[#allocation2 + $0x8] sm:$0xff]
    %v436 = vld [vmem:[#allocation2 + $0x10] sm:$0xff]
    %437 = vst [vmem:[#allocation3 + $0x90] sm:$0xff] %v435
    %438 = vst [vmem:[#allocation3 + $0x98] sm:$0xff] %v436
    %v439 = vld [vmem:[#allocation2 + $0x8] sm:$0xff]
    %v440 = vld [vmem:[#allocation2 + $0x10] sm:$0xff]
    %v441 = vld [vmem:[#allocation2 + $0x18] sm:$0xff]
    %v442 = vld [vmem:[%s118] ss:$4 sm:$0x3]
    %v444 = vperm.slane %v442, 0
    %v445 = vperm.slane %v442, 1
    %446 = vrot.lane.b32.xlu0 %v444, 1
    %v447 = vpop.permute.xlu0 %446
    %448 = vrot.lane.b32.xlu0 %v445, 1
    %v449 = vpop.permute.xlu0 %448
    %v450 = vsel %vm179, %v447, %v449
    %v454 = vmul.f32 %v439, %v447
    %v455 = vmul.f32 %v440, %v450
    %v456 = vmul.f32 %v441, %v449
    %460 = vrot.lane.b32.xlu0 %v454, 127
    %v461 = vpop.permute.xlu0 %460
    %462 = vrot.lane.b32.xlu0 %v455, 127
    %v463 = vpop.permute.xlu0 %462
    %464 = vrot.lane.b32.xlu0 %v456, 127
    %v465 = vpop.permute.xlu0 %464
    %v466 = vsel %vm162, %v461, %v463
    %v467 = vsel %vm162, %v463, %v465
    %470 = vst [vmem:[#allocation3 + $0xb0] sm:$0xff] %v466
    %471 = vst [vmem:[#allocation3 + $0xb8] sm:$0xff] %v467
    %v472 = vld [vmem:[#allocation2 + $0x8] sm:$0xff]
    %v473 = vld [vmem:[#allocation2 + $0x10] sm:$0xff]
    %v474 = vld [vmem:[#allocation2 + $0x18] sm:$0xff]
    %v475 = vld [vmem:[#allocation7] ss:$4 sm:$0x3]
    %v477 = vperm.slane %v475, 0
    %v478 = vperm.slane %v475, 1
    %479 = vrot.lane.b32.xlu0 %v477, 15
    %v480 = vpop.permute.xlu0 %479
    %481 = vrot.lane.b32.xlu0 %v478, 15
    %v482 = vpop.permute.xlu0 %481
    %v483 = vsel %vm144, %v480, %v482
    %v487 = vmul.f32 %v472, %v480
    %v488 = vmul.f32 %v473, %v483
    %v489 = vmul.f32 %v474, %v482
    %493 = vrot.lane.b32.xlu0 %v487, 113
    %v494 = vpop.permute.xlu0 %493
    %495 = vrot.lane.b32.xlu0 %v488, 113
    %v496 = vpop.permute.xlu0 %495
    %497 = vrot.lane.b32.xlu0 %v489, 113
    %v498 = vpop.permute.xlu0 %497
    %v499 = vsel %vm127, %v494, %v496
    %v500 = vsel %vm127, %v496, %v498
    %503 = vst [vmem:[#allocation3 + $0xd0] sm:$0xff] %v499
    %504 = vst [vmem:[#allocation3 + $0xd8] sm:$0xff] %v500
    %v505 = vld [vmem:[#allocation2 + $0x8] sm:$0xff]
    %v506 = vld [vmem:[#allocation2 + $0x10] sm:$0xff]
    %v507 = vld [vmem:[#allocation2 + $0x18] sm:$0xff]
    %511 = vrot.lane.b32.xlu0 %v505, 112
    %v512 = vpop.permute.xlu0 %511
    %513 = vrot.lane.b32.xlu0 %v506, 112
    %v514 = vpop.permute.xlu0 %513
    %515 = vrot.lane.b32.xlu0 %v507, 112
    %v516 = vpop.permute.xlu0 %515
    %v517 = vsel %vm268, %v512, %v514
    %v518 = vsel %vm268, %v514, %v516
    %521 = vst [vmem:[#allocation3 + $0xf0] sm:$0xff] %v517
    %522 = vst [vmem:[#allocation3 + $0xf8] sm:$0xff] %v518
    %v523 = vld [vmem:[#allocation2 + $0x8] sm:$0xff]
    %v524 = vld [vmem:[#allocation2 + $0x10] sm:$0xff]
    %v525 = vld [vmem:[#allocation2 + $0x18] sm:$0xff]
    %v526 = vld [vmem:[%s118] ss:$4 sm:$0x3]
    %v528 = vperm.slane %v526, 0
    %v529 = vperm.slane %v526, 1
    %530 = vrot.lane.b32.xlu0 %v528, 17
    %v531 = vpop.permute.xlu0 %530
    %532 = vrot.lane.b32.xlu0 %v529, 17
    %v533 = vpop.permute.xlu0 %532
    %v534 = vsel %vm89, %v531, %v533
    %v538 = vmul.f32 %v523, %v531
    %v539 = vmul.f32 %v524, %v534
    %v540 = vmul.f32 %v525, %v533
    %544 = vrot.lane.b32.xlu0 %v538, 111
    %v545 = vpop.permute.xlu0 %544
    %546 = vrot.lane.b32.xlu0 %v539, 111
    %v547 = vpop.permute.xlu0 %546
    %548 = vrot.lane.b32.xlu0 %v540, 111
    %v549 = vpop.permute.xlu0 %548
    %v550 = vsel %vm72, %v545, %v547
    %v551 = vsel %vm72, %v547, %v549
    %554 = vst [vmem:[#allocation3 + $0x110] sm:$0xff] %v550
    %555 = vst [vmem:[#allocation3 + $0x118] sm:$0xff] %v551
    %v556 = vld [vmem:[%s1] sm:$0xff]
    %v557 = vld [vmem:[#allocation3] sm:$0xff]
    %v558 = vld [vmem:[#allocation3 + $0x8] sm:$0xff]
    %v559 = vld [vmem:[#allocation3 + $0x10] sm:$0xff]
    %v560 = vld [vmem:[#allocation3 + $0x18] sm:$0xff]
    %v561 = vld [vmem:[#allocation3 + $0x20] sm:$0xff]
    %v562 = vld [vmem:[#allocation3 + $0x28] sm:$0xff]
    %v563 = vld [vmem:[#allocation3 + $0x30] sm:$0xff]
    %v564 = vld [vmem:[#allocation3 + $0x38] sm:$0xff]
    %v565 = vld [vmem:[#allocation3 + $0x40] sm:$0xff]
    %v566 = vld [vmem:[#allocation3 + $0x48] sm:$0xff]
    %v567 = vld [vmem:[#allocation3 + $0x50] sm:$0xff]
    %v568 = vld [vmem:[#allocation3 + $0x58] sm:$0xff]
    %v569 = vld [vmem:[#allocation3 + $0x60] sm:$0xff]
    %v570 = vld [vmem:[#allocation3 + $0x68] sm:$0xff]
    %v571 = vld [vmem:[#allocation3 + $0x70] sm:$0xff]
    %v572 = vld [vmem:[#allocation3 + $0x78] sm:$0xff]
    %v573 = vld [vmem:[#allocation3 + $0x80] sm:$0xff]
    %v574 = vld [vmem:[#allocation3 + $0x88] sm:$0xff]
    %v575 = vld [vmem:[#allocation3 + $0x90] sm:$0xff]
    %v576 = vld [vmem:[#allocation3 + $0x98] sm:$0xff]
    %v577 = vld [vmem:[#allocation3 + $0xa0] sm:$0xff]
    %v578 = vld [vmem:[#allocation3 + $0xa8] sm:$0xff]
    %v579 = vld [vmem:[#allocation3 + $0xb0] sm:$0xff]
    %v580 = vld [vmem:[#allocation3 + $0xb8] sm:$0xff]
    %v581 = vld [vmem:[#allocation3 + $0xc0] sm:$0xff]
    %v582 = vld [vmem:[#allocation3 + $0xc8] sm:$0xff]
    %v583 = vld [vmem:[#allocation3 + $0xd0] sm:$0xff]
    %v584 = vld [vmem:[#allocation3 + $0xd8] sm:$0xff]
    %v585 = vld [vmem:[#allocation3 + $0xe0] sm:$0xff]
    %v586 = vld [vmem:[#allocation3 + $0xe8] sm:$0xff]
    %v587 = vld [vmem:[#allocation3 + $0xf0] sm:$0xff]
    %v588 = vld [vmem:[#allocation3 + $0xf8] sm:$0xff]
    %v589 = vld [vmem:[#allocation3 + $0x100] sm:$0xff]
    %v590 = vld [vmem:[#allocation3 + $0x108] sm:$0xff]
    %v591 = vld [vmem:[#allocation3 + $0x110] sm:$0xff]
    %v592 = vld [vmem:[#allocation3 + $0x118] sm:$0xff]
    %v593 = vld [vmem:[%s2] sm:$0xff]
    %595 = vset.pattern.permute.xlu0 0
    %596 = vperm.xlu0 %595, %v593
    %v597 = vpop.permute.xlu0 %596
    %vm599 = vcmask 588800
    %v601 = vsel %vm599, %v556, 0
    %603 = vmatpush.msra.mxu0 0.0
    %604 = vmatpush.msra.mxu0 0.0
    %605 = vmatpush.msra.mxu0 0.0
    %606 = vmatpush.msra.mxu0 0.0
    %607 = vmatpush.msra.mxu0 0.0
    %608 = vmatpush.msra.mxu0 0.0
    %609 = vmatpush.msra.mxu0 0.0
    %610 = vmatpush.msra.mxu0 %v589
    %611 = vmatpush.msra.mxu0 %v585
    %612 = vmatpush.msra.mxu0 %v581
    %613 = vmatpush.msra.mxu0 %v577
    %614 = vmatpush.msra.mxu0 %v573
    %615 = vmatpush.msra.mxu0 %v569
    %616 = vmatpush.msra.mxu0 %v565
    %617 = vmatpush.msra.mxu0 %v561
    %618 = vmatpush.msra.mxu0 %v557
    %619 = vmatmul.f32.gmra.mxu0 %v601
    %v620 = vpop.f32.mrf.mxu0
    %v621 = vadd.f32 %v597, %v620
    %622 = vdwg.mxu0
    %623 = vmatpush.msra.mxu0 0.0
    %624 = vmatpush.msra.mxu0 0.0
    %625 = vmatpush.msra.mxu0 0.0
    %626 = vmatpush.msra.mxu0 0.0
    %627 = vmatpush.msra.mxu0 0.0
    %628 = vmatpush.msra.mxu0 0.0
    %629 = vmatpush.msra.mxu0 0.0
    %630 = vmatpush.msra.mxu0 %v590
    %631 = vmatpush.msra.mxu0 %v586
    %632 = vmatpush.msra.mxu0 %v582
    %633 = vmatpush.msra.mxu0 %v578
    %634 = vmatpush.msra.mxu0 %v574
    %635 = vmatpush.msra.mxu0 %v570
    %636 = vmatpush.msra.mxu0 %v566
    %637 = vmatpush.msra.mxu0 %v562
    %638 = vmatpush.msra.mxu0 %v558
    %639 = vmatmul.f32.gmra.mxu0 %v601
    %v640 = vpop.f32.mrf.mxu0
    %v641 = vadd.f32 %v597, %v640
    %642 = vdwg.mxu0
    %643 = vmatpush.msra.mxu0 0.0
    %644 = vmatpush.msra.mxu0 0.0
    %645 = vmatpush.msra.mxu0 0.0
    %646 = vmatpush.msra.mxu0 0.0
    %647 = vmatpush.msra.mxu0 0.0
    %648 = vmatpush.msra.mxu0 0.0
    %649 = vmatpush.msra.mxu0 0.0
    %650 = vmatpush.msra.mxu0 %v591
    %651 = vmatpush.msra.mxu0 %v587
    %652 = vmatpush.msra.mxu0 %v583
    %653 = vmatpush.msra.mxu0 %v579
    %654 = vmatpush.msra.mxu0 %v575
    %655 = vmatpush.msra.mxu0 %v571
    %656 = vmatpush.msra.mxu0 %v567
    %657 = vmatpush.msra.mxu0 %v563
    %658 = vmatpush.msra.mxu0 %v559
    %659 = vmatmul.f32.gmra.mxu0 %v601
    %v660 = vpop.f32.mrf.mxu0
    %v661 = vadd.f32 %v597, %v660
    %662 = vdwg.mxu0
    %663 = vmatpush.msra.mxu0 0.0
    %664 = vmatpush.msra.mxu0 0.0
    %665 = vmatpush.msra.mxu0 0.0
    %666 = vmatpush.msra.mxu0 0.0
    %667 = vmatpush.msra.mxu0 0.0
    %668 = vmatpush.msra.mxu0 0.0
    %669 = vmatpush.msra.mxu0 0.0
    %670 = vmatpush.msra.mxu0 %v592
    %671 = vmatpush.msra.mxu0 %v588
    %672 = vmatpush.msra.mxu0 %v584
    %673 = vmatpush.msra.mxu0 %v580
    %674 = vmatpush.msra.mxu0 %v576
    %675 = vmatpush.msra.mxu0 %v572
    %676 = vmatpush.msra.mxu0 %v568
    %677 = vmatpush.msra.mxu0 %v564
    %678 = vmatpush.msra.mxu0 %v560
    %679 = vmatmul.f32.gmra.mxu0 %v601
    %v680 = vpop.f32.mrf.mxu0
    %v681 = vadd.f32 %v597, %v680
    %682 = vdwg.mxu0
    %v683 = vmax.f32 %v621, 0.0
    %v684 = vmax.f32 %v641, 0.0
    %v685 = vmax.f32 %v661, 0.0
    %v686 = vmax.f32 %v681, 0.0
    %687 = vst [vmem:[#allocation9] sm:$0xff] %v683
    %688 = vst [vmem:[#allocation9 + $0x8] sm:$0xff] %v684
    %s689 = scalar_lea.vmem [#allocation9], 16
    %690 = vst [vmem:[%s689] sm:$0xff] %v685
    %691 = vst [vmem:[%s689 + $0x8] sm:$0xff] %v686
    // Predicated region
    $region26: #{tpu_custom_call.1} parent=1 // pred_check
      _
    $region27: #{tpu_custom_call.1} parent=1 // pred_check_branch
      %693 = sbr.rel (0) target = $region29
    $region28: #{tpu_custom_call.1} parent=1 // pred_region
      %695 = vsyncadd [#allocation6], 0
      %s696 = sshll.u32 [#allocation9], 4
      %s697 = int_to_ptr.vmem [resolvable:$true] %s696
      %s698 = sshll.u32 %s4, 4
      %s699 = int_to_ptr.hbm [resolvable:$true] %s698
      %704 = dma.vmem_to_hbm [thread:$0]  %s697, 512, %s699, [#allocation6], 256, 256, 16
    $region29: #{tpu_custom_call.1} parent=1 // pred_fallthru
      _
    // Predicated region
    $region30: #{tpu_custom_call.1} parent=1 // pred_check
      _
    $region31: #{tpu_custom_call.1} parent=1 // pred_check_branch
      %706 = sbr.rel (0) target = $region33
    $region32: #{tpu_custom_call.1} parent=1 // pred_region
      %708 = dma.done [#allocation6], 512
    $region33: #{tpu_custom_call.1} parent=1 // pred_fallthru
      _
    %709 = vsyncpa [#allocation5], 1
    %710 = vsyncpa [#allocation8], 1
    %711 = vsyncpa [#allocation6], 1

</llo_original>
